<compile_context>
chip_gen: v7x
topology: tpu7x:2x2x1
jax: 0.10.0
libtpu: 0.0.40
codegen_flags: <defaults>
</compile_context>

<pallas_src>
import functools

import jax
import jax.numpy as jnp
from jax.experimental import pallas as pl
from jax.experimental.pallas import tpu as pltpu

# Fixed offsets from the module's __init__ (fix_offset=True branch).
_FIX_OFFSET = (0.0, 1.0, 1.25, 1.5, 1.75, 2.0, 2.25, 2.5, 2.75, 3.0,
               3.5, 4.0, 4.5, 5.0, 5.5, 6.0, 7.0, 8.0, 9.0, 10.0)

_FOLD = 32  # rows folded per output block row -> lane width FOLD*K


def _gaussian_smearing_kernel(dist_ref, expand_ref, off_ref, out_ref, *, coeff):
    # dist_ref:   (tile_r, FOLD)      folded distances
    # expand_ref: (FOLD, FOLD*K)      one-hot lane replication matrix
    # off_ref:    (1, FOLD*K)         offsets tiled FOLD times
    # out_ref:    (tile_r, FOLD*K)    lane-dense output block
    d = dist_ref[...]
    # Replicate each dist value across its K lanes via MXU (exact: *1.0 + 0.0).
    d_rep = jnp.dot(d, expand_ref[...], preferred_element_type=jnp.float32)
    diff = d_rep - off_ref[...]
    out_ref[...] = jnp.exp(coeff * diff * diff)


def gaussian_smearing(dist, offsets, coeff, *, max_tile_r=1024):
    """Pallas equivalent of GaussianSmearing.forward.

    dist: any shape; flattened exactly like dist.view(-1, 1).
    offsets: tuple/list of K python floats.
    Returns (N, K) float32.
    """
    offsets = tuple(float(o) for o in offsets)
    k = len(offsets)
    fold = _FOLD
    width = fold * k  # 640 for K=20: multiple of 128 -> unmasked lane-dense vst

    dist_flat = dist.reshape(-1).astype(jnp.float32)
    n = dist_flat.shape[0]
    if n == 0:
        return jnp.zeros((0, k), jnp.float32)

    # Pad to a multiple of `fold` (input is only 4 bytes/row, cheap); the
    # padded tail is sliced off the output at the end (only when needed).
    n_pad = ((n + fold - 1) // fold) * fold
    if n_pad != n:
        dist_flat = jnp.pad(dist_flat, (0, n_pad - n))
    n_folded = n_pad // fold
    dist_folded = dist_flat.reshape(n_folded, fold)

    # Small constant operands (passed as inputs, NOT captured in the kernel).
    off_arr = jnp.asarray(offsets, dtype=jnp.float32)
    off_tiled = jnp.tile(off_arr, (fold,)).reshape(1, width)        # (1, 640)
    expand = (jnp.arange(fold, dtype=jnp.int32)[:, None] ==
              (jnp.arange(width, dtype=jnp.int32)[None, :] // k)
              ).astype(jnp.float32)                                  # (32, 640)

    # Row tile: one block for small problems (block == full array), else a
    # multiple-of-8 tile; Pallas masks the ragged last block.
    tile_r = n_folded if n_folded <= max_tile_r else max_tile_r

    kernel = functools.partial(_gaussian_smearing_kernel, coeff=float(coeff))

    out_folded = pl.pallas_call(
        kernel,
        out_shape=jax.ShapeDtypeStruct((n_folded, width), jnp.float32),
        grid=(pl.cdiv(n_folded, tile_r),),
        in_specs=[
            pl.BlockSpec((tile_r, fold), lambda i: (i, 0)),   # dist rows
            pl.BlockSpec((fold, width), lambda i: (0, 0)),    # expansion const
            pl.BlockSpec((1, width), lambda i: (0, 0)),       # tiled offsets
        ],
        out_specs=pl.BlockSpec((tile_r, width), lambda i: (i, 0)),
        compiler_params=pltpu.CompilerParams(
            dimension_semantics=("parallel",)),
        cost_estimate=pl.CostEstimate(
            flops=int(n_pad * k * (2 * fold + 3)),
            transcendentals=int(n_pad * k),
            bytes_accessed=int(4 * n_pad + 4 * n_pad * k)),
    )(dist_folded, expand, off_tiled)

    # (n_folded, 640) row-major is byte-identical to (n_pad, 20): free reshape.
    out = out_folded.reshape(n_pad, k)
    if n_pad != n:
        out = out[:n]
    return out


class GaussianSmearingJax:
    """Thin wrapper mirroring the PyTorch module's __init__ semantics."""

    def __init__(self, start=0.0, stop=5.0, num_gaussians=50, fix_offset=True):
        self.start = start
        self.stop = stop
        if fix_offset:
            self._offset_tuple = _FIX_OFFSET
            self.num_gaussians = 20
        else:
            self._offset_tuple = tuple(
                float(x) for x in jnp.linspace(start, stop, num_gaussians,
                                               dtype=jnp.float32))
            self.num_gaussians = num_gaussians
        # register_buffer('offset', offset) analogue (for inspection/reference).
        self.offset = jnp.asarray(self._offset_tuple, dtype=jnp.float32)
        step = self._offset_tuple[1] - self._offset_tuple[0]
        self.coeff = -0.5 / step ** 2

    def __repr__(self):
        return (f'GaussianSmearing(start={self.start}, stop={self.stop}, '
                f'num_gaussians={self.num_gaussians})')

    def __call__(self, dist, *, max_tile_r=1024):
        return gaussian_smearing(dist, self._offset_tuple, self.coeff,
                                 max_tile_r=max_tile_r)


def _reference(dist, offset, coeff):
    d = dist.reshape(-1, 1).astype(jnp.float32) - offset.reshape(1, -1)
    return jnp.exp(coeff * d * d)


if __name__ == "__main__":
    key = jax.random.PRNGKey(0)
    module = GaussianSmearingJax()          # fix_offset=True -> K = 20

    # Small flat batch of pairwise distances (128 edges, multiple of 32 ->
    # fold path with no padding / no final slice).
    dist = jax.random.uniform(key, (2, 64), dtype=jnp.float32,
                              minval=0.0, maxval=10.0)
    out = jax.block_until_ready(module(dist))
    ref = _reference(dist, module.offset, module.coeff)
    assert out.shape == (dist.size, module.num_gaussians), out.shape
    assert out.dtype == jnp.float32
    assert jnp.allclose(out, ref, atol=1e-6, rtol=1e-6), (
        float(jnp.max(jnp.abs(out - ref))))

    # Ragged N (1000 -> padded to 1024) with a small tile to exercise the
    # multi-block path (grid=4) and the pad + slice path.
    key2 = jax.random.PRNGKey(1)
    dist2 = jax.random.uniform(key2, (1000,), dtype=jnp.float32,
                               minval=0.0, maxval=10.0)
    out2 = jax.block_until_ready(module(dist2, max_tile_r=8))
    ref2 = _reference(dist2, module.offset, module.coeff)
    assert out2.shape == (1000, module.num_gaussians), out2.shape
    assert jnp.allclose(out2, ref2, atol=1e-6, rtol=1e-6), (
        float(jnp.max(jnp.abs(out2 - ref2))))

    print("KERNEL_OK")
</pallas_src>

<mosaic_0001>
module attributes {stable_mosaic.version = 11 : i64} {
  func.func @_gaussian_smearing_kernel(%arg0: i32, %arg1: memref<4x32xf32, #tpu.memory_space<vmem>>, %arg2: memref<32x640xf32, #tpu.memory_space<vmem>>, %arg3: memref<1x640xf32, #tpu.memory_space<vmem>>, %arg4: memref<4x640xf32, #tpu.memory_space<vmem>>) attributes {dimension_semantics = [#tpu.dimension_semantics<parallel>], iteration_bounds = array<i64: 1>, scalar_prefetch = 0 : i64, scratch_operands = 0 : i64, tpu.core_type = #tpu.core_type<tc>, window_params = [{transform_indices = @transform_0, window_bounds = array<i64: 4, 32>}, {pipeline_mode = #tpu.pipeline_mode<synchronous>, transform_indices = @transform_1, window_bounds = array<i64: 32, 640>}, {pipeline_mode = #tpu.pipeline_mode<synchronous>, transform_indices = @transform_2, window_bounds = array<i64: 1, 640>}, {transform_indices = @transform_3, window_bounds = array<i64: 4, 640>}]} {
    %c0 = arith.constant 0 : index
    %c0_0 = arith.constant 0 : index
    %0 = vector.load %arg1[%c0, %c0_0] : memref<4x32xf32, #tpu.memory_space<vmem>>, vector<4x32xf32>
    %c0_1 = arith.constant 0 : index
    %c0_2 = arith.constant 0 : index
    %1 = vector.load %arg2[%c0_1, %c0_2] : memref<32x640xf32, #tpu.memory_space<vmem>>, vector<32x640xf32>
    %cst = arith.constant dense<0.000000e+00> : vector<4x640xf32>
    %2 = tpu.matmul %0, %1, %cst {dimension_numbers = #tpu.dot_dimension_numbers<[1], [0], [0], [1], [0, 0, 1, 1], [], []>} : vector<4x32xf32>, vector<32x640xf32>, vector<4x640xf32> -> vector<4x640xf32>
    %c0_3 = arith.constant 0 : index
    %c0_4 = arith.constant 0 : index
    %3 = vector.load %arg3[%c0_3, %c0_4] : memref<1x640xf32, #tpu.memory_space<vmem>>, vector<1x640xf32>
    %4 = vector.broadcast %3 : vector<1x640xf32> to vector<4x640xf32>
    %5 = arith.subf %2, %4 : vector<4x640xf32>
    %cst_5 = arith.constant -5.000000e-01 : f32
    %6 = vector.broadcast %cst_5 : f32 to vector<4x640xf32>
    %7 = arith.mulf %6, %5 : vector<4x640xf32>
    %8 = arith.mulf %7, %5 : vector<4x640xf32>
    %9 = math.exp %8 : vector<4x640xf32>
    %c0_6 = arith.constant 0 : index
    %c0_7 = arith.constant 0 : index
    %10 = vector.load %arg4[%c0_6, %c0_7] : memref<4x640xf32, #tpu.memory_space<vmem>>, vector<4x640xf32>
    tpu.vector_store %arg4[%c0_6, %c0_7], %9 {strides = array<i32>} : memref<4x640xf32, #tpu.memory_space<vmem>>, vector<4x640xf32>,
    return
  }
  func.func @transform_0(%arg0: i32) -> (i32, i32) {
    %c0_i32 = arith.constant 0 : i32
    %c0_i32_0 = arith.constant 0 : i32
    return %arg0, %c0_i32 : i32, i32
  }
  func.func @transform_1(%arg0: i32) -> (i32, i32) {
    %c0_i32 = arith.constant 0 : i32
    %c0_i32_0 = arith.constant 0 : i32
    %c0_i32_1 = arith.constant 0 : i32
    return %c0_i32, %c0_i32_0 : i32, i32
  }
  func.func @transform_2(%arg0: i32) -> (i32, i32) {
    %c0_i32 = arith.constant 0 : i32
    %c0_i32_0 = arith.constant 0 : i32
    %c0_i32_1 = arith.constant 0 : i32
    return %c0_i32, %c0_i32_0 : i32, i32
  }
  func.func @transform_3(%arg0: i32) -> (i32, i32) {
    %c0_i32 = arith.constant 0 : i32
    %c0_i32_0 = arith.constant 0 : i32
    return %arg0, %c0_i32 : i32, i32
  }
}

</mosaic_0001>

<llo_original>
// kernel: tpu_custom_call.1
$region0: #{tpu_custom_call.1}
  #allocation0 [shape = 'u32[]', space=smem, size = 0x4, offset = 0x4, fixed_abs, tag = 'smem constant byte address 0x4 - core index']
  #allocation1 [shape = 'u32[144,128]{1,0:T(1,128)}', space=vmem, size = 0x12000, scoped, tag = 'internal scratch']
  %s0 = inlined_call_operand.hbm [shape: f32[4,32], index: 0, kind: input, shape index: {}]
  %s1 = inlined_call_operand.hbm [shape: f32[32,640], index: 1, kind: input, shape index: {}]
  %s2 = inlined_call_operand.vmem [shape: f32[1,640], index: 2, kind: input, shape index: {}]
  %s3 = inlined_call_operand.hbm [shape: f32[4,640], index: 3, kind: output, shape index: {}]
  %s4 = sld [smem:[#allocation0]]
  $region30: #{tpu_custom_call.1} parent=0
    _
  %s6 = ssub.s32 1, %s4
  %s7 = scalar_select 0, %s6, %s4
  $region1: #{tpu_custom_call.1} parent=0
    #allocation2 [shape = 'u8[2048]{0}', space=vmem, size = 0x800, scoped, tag = 'input window, operand 0, single buffered']
    #allocation3 [shape = 's32[1]{0}', space=sflag, size = 0x4, scoped, tag = 'scoped memory for tpu_custom_call.1']
    #allocation4 [shape = 's32[1]{0}', space=sflag, size = 0x4, scoped, tag = 'scoped memory for tpu_custom_call.1']
    #allocation5 [shape = 'u8[81920]{0}', space=vmem, size = 0x14000, scoped, tag = 'input window, operand 1, single buffered']
    #allocation6 [shape = 's32[1]{0}', space=sflag, size = 0x4, scoped, tag = 'scoped memory for tpu_custom_call.1']
    #allocation7 [shape = 'u8[10240]{0}', space=vmem, size = 0x2800, scoped, tag = 'output window, operand 0, single buffered']
    %8 = vsyncpa [#allocation3], 0
    %9 = vsyncpa [#allocation6], 0
    %10 = vsyncpa [#allocation4], 0
    // Predicated region
    $region2: #{tpu_custom_call.1} parent=1 // pred_check
      _
    $region3: #{tpu_custom_call.1} parent=1 // pred_check_branch
      %12 = sbr.rel (0) target = $region5
    $region4: #{tpu_custom_call.1} parent=1 // pred_region
      %s14 = ssub.s32 64, 64
      %15 = vsyncadd [#allocation3], %s14
      %s17 = sshll.u32 [#allocation2], 4
      %s18 = int_to_ptr.vmem [resolvable:$true] %s17
      %20 = dma.hbm_to_vmem [thread:$0]  %s0, 64, %s18, [#allocation3]
    $region5: #{tpu_custom_call.1} parent=1 // pred_fallthru
      _
    // Predicated region
    $region6: #{tpu_custom_call.1} parent=1 // pred_check
      _
    $region7: #{tpu_custom_call.1} parent=1 // pred_check_branch
      %22 = sbr.rel (0) target = $region9
    $region8: #{tpu_custom_call.1} parent=1 // pred_region
      %s24 = ssub.s32 2560, 2560
      %25 = vsyncadd [#allocation6], %s24
      %s26 = sshll.u32 [#allocation5], 4
      %s27 = int_to_ptr.vmem [resolvable:$true] %s26
      %32 = dma.hbm_to_vmem [thread:$0]  %s1, 2560, %s27, [#allocation6], 640, 640, 40
    $region9: #{tpu_custom_call.1} parent=1 // pred_fallthru
      _
    // Predicated region
    $region10: #{tpu_custom_call.1} parent=1 // pred_check
      _
    $region11: #{tpu_custom_call.1} parent=1 // pred_check_branch
      %34 = sbr.rel (0) target = $region13
    $region12: #{tpu_custom_call.1} parent=1 // pred_region
      _
    $region13: #{tpu_custom_call.1} parent=1 // pred_fallthru
      _
    // Predicated region
    $region14: #{tpu_custom_call.1} parent=1 // pred_check
      _
    $region15: #{tpu_custom_call.1} parent=1 // pred_check_branch
      %36 = sbr.rel (0) target = $region17
    $region16: #{tpu_custom_call.1} parent=1 // pred_region
      %37 = dma.done [#allocation3], 64
    $region17: #{tpu_custom_call.1} parent=1 // pred_fallthru
      _
    // Predicated region
    $region18: #{tpu_custom_call.1} parent=1 // pred_check
      _
    $region19: #{tpu_custom_call.1} parent=1 // pred_check_branch
      %39 = sbr.rel (0) target = $region21
    $region20: #{tpu_custom_call.1} parent=1 // pred_region
      %40 = dma.done [#allocation6], 2560
    $region21: #{tpu_custom_call.1} parent=1 // pred_fallthru
      _
    %v41 = vld [vmem:[#allocation2] sm:$0xf]
    %v42 = vld [vmem:[#allocation5] sm:$0xff]
    %v43 = vld [vmem:[#allocation5 + $0x8] sm:$0xff]
    %v44 = vld [vmem:[#allocation5 + $0x10] sm:$0xff]
    %v45 = vld [vmem:[#allocation5 + $0x18] sm:$0xff]
    %v46 = vld [vmem:[#allocation5 + $0x20] sm:$0xff]
    %v47 = vld [vmem:[#allocation5 + $0x28] sm:$0xff]
    %v48 = vld [vmem:[#allocation5 + $0x30] sm:$0xff]
    %v49 = vld [vmem:[#allocation5 + $0x38] sm:$0xff]
    %v50 = vld [vmem:[#allocation5 + $0x40] sm:$0xff]
    %v51 = vld [vmem:[#allocation5 + $0x48] sm:$0xff]
    %v52 = vld [vmem:[#allocation5 + $0x50] sm:$0xff]
    %v53 = vld [vmem:[#allocation5 + $0x58] sm:$0xff]
    %v54 = vld [vmem:[#allocation5 + $0x60] sm:$0xff]
    %v55 = vld [vmem:[#allocation5 + $0x68] sm:$0xff]
    %v56 = vld [vmem:[#allocation5 + $0x70] sm:$0xff]
    %v57 = vld [vmem:[#allocation5 + $0x78] sm:$0xff]
    %v58 = vld [vmem:[#allocation5 + $0x80] sm:$0xff]
    %v59 = vld [vmem:[#allocation5 + $0x88] sm:$0xff]
    %v60 = vld [vmem:[#allocation5 + $0x90] sm:$0xff]
    %v61 = vld [vmem:[#allocation5 + $0x98] sm:$0xff]
    %vm62 = vcmask 261120
    %v64 = vsel %vm62, %v41, 0
    %66 = vmatprep.subr.mxu0 %v43
    %67 = vmatpush1.msra.mxu0 %v42
    %68 = vmatprep.subr.mxu0 %v48
    %69 = vmatpush1.msra.mxu0 %v47
    %70 = vmatprep.subr.mxu0 %v53
    %71 = vmatpush1.msra.mxu0 %v52
    %72 = vmatprep.subr.mxu0 %v58
    %73 = vmatpush1.msra.mxu0 %v57
    %74 = vmatprep.subr.mxu0 0.0
    %75 = vmatpush1.msra.mxu0 0.0
    %76 = vmatprep.subr.mxu0 0.0
    %77 = vmatpush1.msra.mxu0 0.0
    %78 = vmatprep.subr.mxu0 0.0
    %79 = vmatpush1.msra.mxu0 0.0
    %80 = vmatprep.subr.mxu0 0.0
    %81 = vmatpush1.msra.mxu0 0.0
    %82 = vmatprep.subr.mxu0 0.0
    %83 = vmatpush1.msra.mxu0 0.0
    %84 = vmatprep.subr.mxu0 0.0
    %85 = vmatpush1.msra.mxu0 0.0
    %86 = vmatprep.subr.mxu0 0.0
    %87 = vmatpush1.msra.mxu0 0.0
    %88 = vmatprep.subr.mxu0 0.0
    %89 = vmatpush1.msra.mxu0 0.0
    %90 = vmatprep.subr.mxu0 0.0
    %91 = vmatpush1.msra.mxu0 0.0
    %92 = vmatprep.subr.mxu0 0.0
    %93 = vmatpush1.msra.mxu0 0.0
    %94 = vmatprep.subr.mxu0 0.0
    %95 = vmatpush1.msra.mxu0 0.0
    %96 = vmatprep.subr.mxu0 0.0
    %97 = vmatpush1.msra.mxu0 0.0
    %98 = vmatprep.subr.mxu0 0.0
    %99 = vmatpush1.msra.mxu0 0.0
    %100 = vmatprep.subr.mxu0 0.0
    %101 = vmatpush1.msra.mxu0 0.0
    %102 = vmatprep.subr.mxu0 0.0
    %103 = vmatpush1.msra.mxu0 0.0
    %104 = vmatprep.subr.mxu0 0.0
    %105 = vmatpush1.msra.mxu0 0.0
    %106 = vmatprep.subr.mxu0 0.0
    %107 = vmatpush1.msra.mxu0 0.0
    %108 = vmatprep.subr.mxu0 0.0
    %109 = vmatpush1.msra.mxu0 0.0
    %110 = vmatprep.subr.mxu0 0.0
    %111 = vmatpush1.msra.mxu0 0.0
    %112 = vmatprep.subr.mxu0 0.0
    %113 = vmatpush1.msra.mxu0 0.0
    %114 = vmatprep.subr.mxu0 0.0
    %115 = vmatpush1.msra.mxu0 0.0
    %116 = vmatprep.subr.mxu0 0.0
    %117 = vmatpush1.msra.mxu0 0.0
    %118 = vmatprep.subr.mxu0 0.0
    %119 = vmatpush1.msra.mxu0 0.0
    %120 = vmatprep.subr.mxu0 0.0
    %121 = vmatpush1.msra.mxu0 0.0
    %122 = vmatprep.subr.mxu0 0.0
    %123 = vmatpush1.msra.mxu0 0.0
    %124 = vmatprep.subr.mxu0 0.0
    %125 = vmatpush1.msra.mxu0 0.0
    %126 = vmatprep.subr.mxu0 0.0
    %127 = vmatpush1.msra.mxu0 0.0
    %128 = vmatprep.subr.mxu0 0.0
    %129 = vmatpush1.msra.mxu0 0.0
    %130 = vmatprep.mubr.f32.mxu0 0.0
    %131 = vmatmul.mubr.f32.gmra.mrb[0].mxu0 %v64
    %v132 = vpop.f32.mrb[0].mxu0
    %v133 = vadd.f32 0.0, %v132
    %v134 = vpop.f32.mrb[0].mxu0
    %v135 = vadd.f32 0.0, %v134
    %136 = vdwg.mxu0
    %137 = vmatprep.subr.mxu0 %v45
    %138 = vmatpush1.msra.mxu0 %v44
    %139 = vmatprep.subr.mxu0 %v50
    %140 = vmatpush1.msra.mxu0 %v49
    %141 = vmatprep.subr.mxu0 %v55
    %142 = vmatpush1.msra.mxu0 %v54
    %143 = vmatprep.subr.mxu0 %v60
    %144 = vmatpush1.msra.mxu0 %v59
    %145 = vmatprep.subr.mxu0 0.0
    %146 = vmatpush1.msra.mxu0 0.0
    %147 = vmatprep.subr.mxu0 0.0
    %148 = vmatpush1.msra.mxu0 0.0
    %149 = vmatprep.subr.mxu0 0.0
    %150 = vmatpush1.msra.mxu0 0.0
    %151 = vmatprep.subr.mxu0 0.0
    %152 = vmatpush1.msra.mxu0 0.0
    %153 = vmatprep.subr.mxu0 0.0
    %154 = vmatpush1.msra.mxu0 0.0
    %155 = vmatprep.subr.mxu0 0.0
    %156 = vmatpush1.msra.mxu0 0.0
    %157 = vmatprep.subr.mxu0 0.0
    %158 = vmatpush1.msra.mxu0 0.0
    %159 = vmatprep.subr.mxu0 0.0
    %160 = vmatpush1.msra.mxu0 0.0
    %161 = vmatprep.subr.mxu0 0.0
    %162 = vmatpush1.msra.mxu0 0.0
    %163 = vmatprep.subr.mxu0 0.0
    %164 = vmatpush1.msra.mxu0 0.0
    %165 = vmatprep.subr.mxu0 0.0
    %166 = vmatpush1.msra.mxu0 0.0
    %167 = vmatprep.subr.mxu0 0.0
    %168 = vmatpush1.msra.mxu0 0.0
    %169 = vmatprep.subr.mxu0 0.0
    %170 = vmatpush1.msra.mxu0 0.0
    %171 = vmatprep.subr.mxu0 0.0
    %172 = vmatpush1.msra.mxu0 0.0
    %173 = vmatprep.subr.mxu0 0.0
    %174 = vmatpush1.msra.mxu0 0.0
    %175 = vmatprep.subr.mxu0 0.0
    %176 = vmatpush1.msra.mxu0 0.0
    %177 = vmatprep.subr.mxu0 0.0
    %178 = vmatpush1.msra.mxu0 0.0
    %179 = vmatprep.subr.mxu0 0.0
    %180 = vmatpush1.msra.mxu0 0.0
    %181 = vmatprep.subr.mxu0 0.0
    %182 = vmatpush1.msra.mxu0 0.0
    %183 = vmatprep.subr.mxu0 0.0
    %184 = vmatpush1.msra.mxu0 0.0
    %185 = vmatprep.subr.mxu0 0.0
    %186 = vmatpush1.msra.mxu0 0.0
    %187 = vmatprep.subr.mxu0 0.0
    %188 = vmatpush1.msra.mxu0 0.0
    %189 = vmatprep.subr.mxu0 0.0
    %190 = vmatpush1.msra.mxu0 0.0
    %191 = vmatprep.subr.mxu0 0.0
    %192 = vmatpush1.msra.mxu0 0.0
    %193 = vmatprep.subr.mxu0 0.0
    %194 = vmatpush1.msra.mxu0 0.0
    %195 = vmatprep.subr.mxu0 0.0
    %196 = vmatpush1.msra.mxu0 0.0
    %197 = vmatprep.subr.mxu0 0.0
    %198 = vmatpush1.msra.mxu0 0.0
    %199 = vmatprep.subr.mxu0 0.0
    %200 = vmatpush1.msra.mxu0 0.0
    %201 = vmatprep.mubr.f32.mxu0 0.0
    %202 = vmatmul.mubr.f32.gmra.mrb[0].mxu0 %v64
    %v203 = vpop.f32.mrb[0].mxu0
    %v204 = vadd.f32 0.0, %v203
    %v205 = vpop.f32.mrb[0].mxu0
    %v206 = vadd.f32 0.0, %v205
    %207 = vdwg.mxu0
    %208 = vmatprep.subr.mxu0 0.0
    %209 = vmatpush1.msra.mxu0 %v46
    %210 = vmatprep.subr.mxu0 0.0
    %211 = vmatpush1.msra.mxu0 %v51
    %212 = vmatprep.subr.mxu0 0.0
    %213 = vmatpush1.msra.mxu0 %v56
    %214 = vmatprep.subr.mxu0 0.0
    %215 = vmatpush1.msra.mxu0 %v61
    %216 = vmatprep.subr.mxu0 0.0
    %217 = vmatpush1.msra.mxu0 0.0
    %218 = vmatprep.subr.mxu0 0.0
    %219 = vmatpush1.msra.mxu0 0.0
    %220 = vmatprep.subr.mxu0 0.0
    %221 = vmatpush1.msra.mxu0 0.0
    %222 = vmatprep.subr.mxu0 0.0
    %223 = vmatpush1.msra.mxu0 0.0
    %224 = vmatprep.subr.mxu0 0.0
    %225 = vmatpush1.msra.mxu0 0.0
    %226 = vmatprep.subr.mxu0 0.0
    %227 = vmatpush1.msra.mxu0 0.0
    %228 = vmatprep.subr.mxu0 0.0
    %229 = vmatpush1.msra.mxu0 0.0
    %230 = vmatprep.subr.mxu0 0.0
    %231 = vmatpush1.msra.mxu0 0.0
    %232 = vmatprep.subr.mxu0 0.0
    %233 = vmatpush1.msra.mxu0 0.0
    %234 = vmatprep.subr.mxu0 0.0
    %235 = vmatpush1.msra.mxu0 0.0
    %236 = vmatprep.subr.mxu0 0.0
    %237 = vmatpush1.msra.mxu0 0.0
    %238 = vmatprep.subr.mxu0 0.0
    %239 = vmatpush1.msra.mxu0 0.0
    %240 = vmatprep.subr.mxu0 0.0
    %241 = vmatpush1.msra.mxu0 0.0
    %242 = vmatprep.subr.mxu0 0.0
    %243 = vmatpush1.msra.mxu0 0.0
    %244 = vmatprep.subr.mxu0 0.0
    %245 = vmatpush1.msra.mxu0 0.0
    %246 = vmatprep.subr.mxu0 0.0
    %247 = vmatpush1.msra.mxu0 0.0
    %248 = vmatprep.subr.mxu0 0.0
    %249 = vmatpush1.msra.mxu0 0.0
    %250 = vmatprep.subr.mxu0 0.0
    %251 = vmatpush1.msra.mxu0 0.0
    %252 = vmatprep.subr.mxu0 0.0
    %253 = vmatpush1.msra.mxu0 0.0
    %254 = vmatprep.subr.mxu0 0.0
    %255 = vmatpush1.msra.mxu0 0.0
    %256 = vmatprep.subr.mxu0 0.0
    %257 = vmatpush1.msra.mxu0 0.0
    %258 = vmatprep.subr.mxu0 0.0
    %259 = vmatpush1.msra.mxu0 0.0
    %260 = vmatprep.subr.mxu0 0.0
    %261 = vmatpush1.msra.mxu0 0.0
    %262 = vmatprep.subr.mxu0 0.0
    %263 = vmatpush1.msra.mxu0 0.0
    %264 = vmatprep.subr.mxu0 0.0
    %265 = vmatpush1.msra.mxu0 0.0
    %266 = vmatprep.subr.mxu0 0.0
    %267 = vmatpush1.msra.mxu0 0.0
    %268 = vmatprep.subr.mxu0 0.0
    %269 = vmatpush1.msra.mxu0 0.0
    %270 = vmatprep.subr.mxu0 0.0
    %271 = vmatpush1.msra.mxu0 0.0
    %272 = vmatprep.mubr.f32.mxu0 0.0
    %273 = vmatmul.mubr.f32.gmra.mrb[0].mxu0 %v64
    %v274 = vpop.f32.mrb[0].mxu0
    %v275 = vadd.f32 0.0, %v274
    %v276 = vpop.f32.mrb[0].mxu0
    %277 = vdwg.mxu0
    %v278 = vld [vmem:[%s2] sm:$0x1f]
    %v280 = vlaneseq
    %v281 = vshrl.u32 %v280, 7
    %v282 = vsub.s32 0, %v281
    %v283 = vrot.slane %v278, %v282
    %v284 = vlaneseq
    %v285 = vshrl.u32 %v284, 7
    %v286 = vsub.s32 1, %v285
    %v287 = vrot.slane %v278, %v286
    %v288 = vlaneseq
    %v289 = vshrl.u32 %v288, 7
    %v290 = vsub.s32 2, %v289
    %v291 = vrot.slane %v278, %v290
    %v292 = vlaneseq
    %v293 = vshrl.u32 %v292, 7
    %v294 = vsub.s32 3, %v293
    %v295 = vrot.slane %v278, %v294
    %v296 = vlaneseq
    %v297 = vshrl.u32 %v296, 7
    %v298 = vsub.s32 4, %v297
    %v299 = vrot.slane %v278, %v298
    %v305 = vsub.f32 %v133, %v283
    %v306 = vsub.f32 %v135, %v287
    %v307 = vsub.f32 %v204, %v291
    %v308 = vsub.f32 %v206, %v295
    %v309 = vsub.f32 %v275, %v299
    %v310 = vmul.f32 %v305, -0.5
    %v311 = vmul.f32 %v306, -0.5
    %v312 = vmul.f32 %v307, -0.5
    %v313 = vmul.f32 %v308, -0.5
    %v314 = vmul.f32 %v309, -0.5
    %v315 = vmul.f32 %v310, %v305
    %v316 = vmul.f32 %v311, %v306
    %v317 = vmul.f32 %v312, %v307
    %v318 = vmul.f32 %v313, %v308
    %v319 = vmul.f32 %v314, %v309
    %v320 = vmul.f32 %v315, 1.442695
    %v321 = vpow.pop %v320
    %v322 = vmul.f32 %v316, 1.442695
    %v323 = vpow.pop %v322
    %v324 = vmul.f32 %v317, 1.442695
    %v325 = vpow.pop %v324
    %v326 = vmul.f32 %v318, 1.442695
    %v327 = vpow.pop %v326
    %v328 = vmul.f32 %v319, 1.442695
    %v329 = vpow.pop %v328
    %v334 = vcombine.low %v321, %v323
    %v335 = vcombine.low %v325, %v327
    %338 = vst [vmem:[#allocation7] sm:$0xff] %v334
    %339 = vst [vmem:[#allocation7 + $0x8] sm:$0xff] %v335
    %340 = vst [vmem:[#allocation7 + $0x10] sm:$0xf] %v329
    // Predicated region
    $region22: #{tpu_custom_call.1} parent=1 // pred_check
      _
    $region23: #{tpu_custom_call.1} parent=1 // pred_check_branch
      %342 = sbr.rel (0) target = $region25
    $region24: #{tpu_custom_call.1} parent=1 // pred_region
      %s344 = ssub.s32 320, 320
      %345 = vsyncadd [#allocation4], %s344
      %s347 = sshll.u32 [#allocation7], 4
      %s348 = int_to_ptr.vmem [resolvable:$true] %s347
      %350 = dma.vmem_to_hbm [thread:$0]  %s348, 320, %s3, [#allocation4]
    $region25: #{tpu_custom_call.1} parent=1 // pred_fallthru
      _
    // Predicated region
    $region26: #{tpu_custom_call.1} parent=1 // pred_check
      _
    $region27: #{tpu_custom_call.1} parent=1 // pred_check_branch
      %352 = sbr.rel (0) target = $region29
    $region28: #{tpu_custom_call.1} parent=1 // pred_region
      %353 = dma.done [#allocation4], 320
    $region29: #{tpu_custom_call.1} parent=1 // pred_fallthru
      _
    %354 = vsyncpa [#allocation3], 1
    %355 = vsyncpa [#allocation6], 1
    %356 = vsyncpa [#allocation4], 1

</llo_original>
